<compile_context>
chip_gen: v5e
topology: v5e:2x2
jax: 0.10.0
libtpu: 0.0.40
codegen_flags: <defaults>
</compile_context>

<pallas_src>
import functools

import jax
import jax.numpy as jnp
from jax.experimental import pallas as pl
from jax.experimental.pallas import tpu as pltpu

_LANE = 128
_SUBLANE = 8
_TARGET_BLOCK_BYTES = 3 * 1024 * 1024   # ~3 MiB/block -> ~12 MiB across the 4 pipeline bufs
_MAX_LANE_TILE = 4096                   # lane-tile cap (multiple of 128)


def _pos_add_kernel(x_ref, pos_ref, o_ref):
    # x_ref / o_ref: (tm, tn) block ; pos_ref: (1, tn) block, broadcast over rows.
    o_ref[...] = x_ref[...] + pos_ref[...]


def _round_up(v: int, m: int) -> int:
    return (v + m - 1) // m * m


def _choose_blocks(rows: int, cols: int, itemsize: int):
    """Pick (tm, tn): block bounded by TOTAL bytes, tiles aligned to (8, 128),
    and >= 2 grid programs whenever the problem is splittable (v7x: 2 TensorCores)."""
    # Lane (last-dim) tile: full extent when small, otherwise a 128-multiple cap.
    # A partial last block (cols % tn != 0) is handled by Pallas with masked stores.
    tn = cols if cols <= _MAX_LANE_TILE else _MAX_LANE_TILE

    # Sublane (row) tile: bound the TOTAL block footprint, not just the row count.
    row_bytes = max(tn * itemsize, 1)
    tm = max(1, _TARGET_BLOCK_BYTES // row_bytes)
    if tm >= rows:
        tm = rows   # full extent: exempt from the multiple-of-8 rule
    else:
        tm = min(rows, max(_SUBLANE, (tm // _SUBLANE) * _SUBLANE))

    # Guarantee >= 2 programs so both v7x TensorCores get work (when splittable).
    if pl.cdiv(rows, tm) * pl.cdiv(cols, tn) < 2:
        if rows >= 2 * _SUBLANE:
            tm = max(_SUBLANE, ((rows // 2) // _SUBLANE) * _SUBLANE)
        elif cols >= 2 * _LANE:
            tn = max(_LANE, ((cols // 2) // _LANE) * _LANE)
    return tm, tn


@functools.partial(jax.jit, donate_argnums=(0,))
def dance_position_embedding(x: jax.Array, position_embeddings: jax.Array) -> jax.Array:
    """x: (b, n, t, c); position_embeddings: (max_len, c). Returns x + pos[:t].

    NOTE: x is donated (its HBM buffer is reused for the output); do not reuse x
    after calling this function.
    """
    b, n, t, c = x.shape
    max_len = position_embeddings.shape[0]
    if t > max_len:
        raise ValueError(f"sequence length t={t} exceeds max_len={max_len}")

    rows = b * n
    tc = t * c
    itemsize = jnp.dtype(x.dtype).itemsize

    # Flatten to a lane-dense 2-D broadcast-add; cast pos so the add stays in x.dtype.
    x2 = x.reshape(rows, tc)
    pos2 = position_embeddings[:t, :].astype(x.dtype).reshape(1, tc)

    tm, tn = _choose_blocks(rows, tc, itemsize)
    n_col = pl.cdiv(tc, tn)
    n_row = pl.cdiv(rows, tm)
    grid = (n_col, n_row)   # column axis OUTER -> pos tile re-DMAs only per column block

    # Explicit VMEM budget: 2x double-buffered x + 2x output blocks + pos (8-sublane
    # padded, double-buffered) + headroom.  Safe on v5e/v6e (128 MiB) and v7x (64 MiB).
    blk_vmem = _round_up(tm, _SUBLANE) * _round_up(tn, _LANE) * itemsize
    pos_vmem = _SUBLANE * _round_up(tn, _LANE) * itemsize
    vmem_limit = int(min(max(4 * blk_vmem + 2 * pos_vmem + (4 << 20), 16 << 20), 40 << 20))

    cost = pl.CostEstimate(
        flops=rows * tc,
        transcendentals=0,
        bytes_accessed=2 * rows * tc * itemsize + tc * itemsize,
    )

    out2 = pl.pallas_call(
        _pos_add_kernel,
        out_shape=jax.ShapeDtypeStruct((rows, tc), x.dtype),
        grid_spec=pltpu.PrefetchScalarGridSpec(
            num_scalar_prefetch=0,
            grid=grid,
            in_specs=[
                pl.BlockSpec((tm, tn), lambda j, i: (i, j)),   # x: streamed blocks
                pl.BlockSpec((1, tn), lambda j, i: (0, j)),    # pos: per-column tile
            ],
            out_specs=pl.BlockSpec((tm, tn), lambda j, i: (i, j)),
        ),
        compiler_params=pltpu.CompilerParams(
            dimension_semantics=("parallel", "parallel"),
            vmem_limit_bytes=vmem_limit,
        ),
        input_output_aliases={0: 0},   # out = x + pos, in place (x is donated by the jit)
        cost_estimate=cost,
    )(x2, pos2)

    return out2.reshape(b, n, t, c)


if __name__ == "__main__":
    # Small shapes consistent with the module's forward: x is (b, n, t, d_model).
    b, n, t, d_model = 2, 4, 8, 32
    max_len = 16

    key = jax.random.PRNGKey(0)
    kx, kp = jax.random.split(key)

    x = jax.random.normal(kx, (b, n, t, d_model), dtype=jnp.float32)
    # nn.init.uniform_(self.position_embeddings, -0.1, 0.1) -- deterministic here.
    position_embeddings = jax.random.uniform(
        kp, (max_len, d_model), minval=-0.1, maxval=0.1, dtype=jnp.float32
    )

    # x is DONATED into the kernel, so build all references (and the bf16 copy of x)
    # BEFORE calling the kernel.
    ref = x + position_embeddings[:t, :][None, None, :, :]
    x_bf16 = x.astype(jnp.bfloat16)
    ref_bf16 = x_bf16 + position_embeddings[:t, :].astype(jnp.bfloat16)[None, None]

    out = jax.block_until_ready(dance_position_embedding(x, position_embeddings))
    assert out.shape == (b, n, t, d_model)
    assert jnp.allclose(out, ref, atol=1e-6), "mismatch vs reference (f32)"

    # bf16 input path: pos is cast to x.dtype in the wrapper (output stays bf16;
    # intentionally differs from PyTorch's mixed-dtype promotion to f32).
    out_bf16 = jax.block_until_ready(dance_position_embedding(x_bf16, position_embeddings))
    assert out_bf16.dtype == jnp.bfloat16
    assert jnp.allclose(
        out_bf16.astype(jnp.float32), ref_bf16.astype(jnp.float32), atol=1e-2
    ), "mismatch vs reference (bf16)"

    print("KERNEL_OK")
</pallas_src>

<mosaic_0001>
module attributes {stable_mosaic.version = 11 : i64} {
  func.func @_pos_add_kernel(%arg0: i32, %arg1: i32, %arg2: memref<8x128xf32, #tpu.memory_space<vmem>>, %arg3: memref<1x128xf32, #tpu.memory_space<vmem>>, %arg4: memref<8x128xf32, #tpu.memory_space<vmem>>) attributes {dimension_semantics = [#tpu.dimension_semantics<parallel>, #tpu.dimension_semantics<parallel>], iteration_bounds = array<i64: 2, 1>, scalar_prefetch = 0 : i64, scratch_operands = 0 : i64, tpu.core_type = #tpu.core_type<tc>, window_params = [{transform_indices = @transform_0, window_bounds = array<i64: 8, 128>}, {transform_indices = @transform_1, window_bounds = array<i64: 1, 128>}, {transform_indices = @transform_2, window_bounds = array<i64: 8, 128>}]} {
    %c0 = arith.constant 0 : index
    %c0_0 = arith.constant 0 : index
    %0 = vector.load %arg2[%c0, %c0_0] : memref<8x128xf32, #tpu.memory_space<vmem>>, vector<8x128xf32>
    %c0_1 = arith.constant 0 : index
    %c0_2 = arith.constant 0 : index
    %1 = vector.load %arg3[%c0_1, %c0_2] : memref<1x128xf32, #tpu.memory_space<vmem>>, vector<1x128xf32>
    %2 = vector.broadcast %1 : vector<1x128xf32> to vector<8x128xf32>
    %3 = arith.addf %0, %2 : vector<8x128xf32>
    %c0_3 = arith.constant 0 : index
    %c0_4 = arith.constant 0 : index
    %4 = vector.load %arg4[%c0_3, %c0_4] : memref<8x128xf32, #tpu.memory_space<vmem>>, vector<8x128xf32>
    tpu.vector_store %arg4[%c0_3, %c0_4], %3 {strides = array<i32>} : memref<8x128xf32, #tpu.memory_space<vmem>>, vector<8x128xf32>,
    return
  }
  func.func @transform_0(%arg0: i32, %arg1: i32) -> (i32, i32) {
    %c0_i32 = arith.constant 0 : i32
    return %arg1, %arg0 : i32, i32
  }
  func.func @transform_1(%arg0: i32, %arg1: i32) -> (i32, i32) {
    %c0_i32 = arith.constant 0 : i32
    %c0_i32_0 = arith.constant 0 : i32
    return %c0_i32, %arg0 : i32, i32
  }
  func.func @transform_2(%arg0: i32, %arg1: i32) -> (i32, i32) {
    %c0_i32 = arith.constant 0 : i32
    return %arg1, %arg0 : i32, i32
  }
}

</mosaic_0001>

<llo_original>
// kernel: dance_position_embedding.1
$region0: #{dance_position_embedding.1}
  #allocation0 [shape = 'u32[]', space=smem, size = 0x4, offset = 0x4, fixed_abs, tag = 'smem constant byte address 0x4 - core index']
  #allocation1 [shape = 'u32[72,128]{1,0:T(1,128)}', space=vmem, size = 0x9000, scoped, tag = 'internal scratch']
  %s0 = inlined_call_operand.vmem [shape: f32[8,256], index: 0, kind: input, shape index: {}, may-alias: {0,2}]
  %s1 = inlined_call_operand.vmem [shape: f32[1,256], index: 1, kind: input, shape index: {}]
  %s2 = inlined_call_operand.vmem [shape: f32[8,256], index: 2, kind: output, shape index: {}, may-alias: {0,2}]
  %s3 = sld [smem:[#allocation0]]
  $region41: #{dance_position_embedding.1} parent=0
    _
  %s5 = ssub.s32 1, %s3
  %s6 = scalar_select 0, %s5, %s3
  loop: start=0, step=1, limit=4
  $region2: #{dance_position_embedding.1} parent=0 // loop_pre_header
    _
  $region3: #{dance_position_embedding.1} parent=0 // loop_header
    %s8 = sphi 0, %s12
    %p9 = scmp.ge.s32.totalorder %s8, 4
    %s15 = sphi 0, %s27
    %s16 = sphi 0, %s23
    %s17 = sphi 0, %s15
    %s18 = sphi 0, %s16
    %s19 = sphi 0, %s17
    %s20 = sphi 0, %s18
    %s32 = sphi 0, %s34
    %s35 = sphi 0, %s32
    %s36 = sphi 0, %s35
    %s52 = sphi 0, %s36
    %s58 = sphi 0, %s60
    %s61 = sphi 0, %s58
    %s62 = sphi 0, %s61
    %s78 = sphi 0, %s62
    %s86 = sphi 0, %s88
    %s89 = sphi 0, %s86
    %s90 = sphi 0, %s89
    %s106 = sphi 0, %s90
  $region4: #{dance_position_embedding.1} parent=0 // loop_header_branch
    %11 = sbr.rel (%p9) target = $region8
  $region5: #{dance_position_embedding.1} parent=0 // loop_body
    %s13 = ssub.s32 %s8, 1
    %s14 = ssub.s32 %s8, 2
    %s21 = sadd.s32 1, %s16
    %p22 = scmp.ge.s32.totalorder %s21, 1
    %s23 = scalar_select %p22, 0, %s21
    %s24 = sadd.s32 1, %s15
    %s25 = scalar_select %p22, %s24, %s15
    %p26 = scmp.ge.s32.totalorder %s25, 2
    %s27 = scalar_select %p26, 0, %s25
    %s28 = ssub.s32 %s16, %s23
    %s29 = ssub.s32 %s15, %s27
    %s30 = sor.u32 %s28, %s29
    %p31 = scmp.eq.s32.totalorder %s30, 0
    %s33 = sadd.s32 %s32, 1
    %s34 = scalar_select %p31, %s32, %s33
    %p37 = pneg %p31
    %p38 = scmp.eq.s32.totalorder %s8, 1
    %p39 = por %p37, %p38
    %p40 = scmp.ne.s32.totalorder %s32, %s35
    %p41 = scmp.eq.s32.totalorder %s8, 0
    %p42 = por %p40, %p41
    %p43 = scmp.ne.s32.totalorder %s32, %s35
    %p44 = scmp.eq.s32.totalorder %s13, 1
    %p45 = por %p43, %p44
    %p46 = scmp.ne.s32.totalorder %s35, %s36
    %p47 = scmp.eq.s32.totalorder %s13, 0
    %p48 = por %p46, %p47
    %p49 = scmp.ne.s32.totalorder %s35, %s36
    %p50 = scmp.eq.s32.totalorder %s14, 1
    %p51 = por %p49, %p50
    %p53 = scmp.ne.s32.totalorder %s36, %s52
    %p54 = scmp.eq.s32.totalorder %s14, 0
    %p55 = por %p53, %p54
    %s56 = ssub.s32 %s15, %s27
    %p57 = scmp.eq.s32.totalorder %s56, 0
    %s59 = sadd.s32 %s58, 1
    %s60 = scalar_select %p57, %s58, %s59
    %p63 = pneg %p57
    %p64 = scmp.eq.s32.totalorder %s8, 1
    %p65 = por %p63, %p64
    %p66 = scmp.ne.s32.totalorder %s58, %s61
    %p67 = scmp.eq.s32.totalorder %s8, 0
    %p68 = por %p66, %p67
    %p69 = scmp.ne.s32.totalorder %s58, %s61
    %p70 = scmp.eq.s32.totalorder %s13, 1
    %p71 = por %p69, %p70
    %p72 = scmp.ne.s32.totalorder %s61, %s62
    %p73 = scmp.eq.s32.totalorder %s13, 0
    %p74 = por %p72, %p73
    %p75 = scmp.ne.s32.totalorder %s61, %s62
    %p76 = scmp.eq.s32.totalorder %s14, 1
    %p77 = por %p75, %p76
    %p79 = scmp.ne.s32.totalorder %s62, %s78
    %p80 = scmp.eq.s32.totalorder %s14, 0
    %p81 = por %p79, %p80
    %s82 = ssub.s32 %s16, %s23
    %s83 = ssub.s32 %s15, %s27
    %s84 = sor.u32 %s82, %s83
    %p85 = scmp.eq.s32.totalorder %s84, 0
    %s87 = sadd.s32 %s86, 1
    %s88 = scalar_select %p85, %s86, %s87
    %p91 = pneg %p85
    %p92 = scmp.eq.s32.totalorder %s8, 1
    %p93 = por %p91, %p92
    %p94 = scmp.ne.s32.totalorder %s86, %s89
    %p95 = scmp.eq.s32.totalorder %s8, 0
    %p96 = por %p94, %p95
    %p97 = scmp.ne.s32.totalorder %s86, %s89
    %p98 = scmp.eq.s32.totalorder %s13, 1
    %p99 = por %p97, %p98
    %p100 = scmp.ne.s32.totalorder %s89, %s90
    %p101 = scmp.eq.s32.totalorder %s13, 0
    %p102 = por %p100, %p101
    %p103 = scmp.ne.s32.totalorder %s89, %s90
    %p104 = scmp.eq.s32.totalorder %s14, 1
    %p105 = por %p103, %p104
    %p107 = scmp.ne.s32.totalorder %s90, %s106
    %p108 = scmp.eq.s32.totalorder %s14, 0
    %p109 = por %p107, %p108
    %p110 = scmp.le.s32.totalorder 1, %s8
    %p111 = scmp.lt.s32.totalorder %s8, 3
    %p112 = pnand %p110, %p111
    %p113 = pneg %p112
    // Predicated region
    $region9: #{dance_position_embedding.1} parent=5 // pred_check
      _
    $region10: #{dance_position_embedding.1} parent=5 // pred_check_branch
      %115 = sbr.rel (%p112) target = $region12
    $region11: #{dance_position_embedding.1} parent=5 // pred_region
      %s116 = ssub.s32 %s8, 1
    $region12: #{dance_position_embedding.1} parent=5 // pred_fallthru
      _
    %p117 = scmp.lt.s32.totalorder %s8, 2
    // Predicated region
    $region13: #{dance_position_embedding.1} parent=5 // pred_check
      %p118 = pneg %p117
    $region14: #{dance_position_embedding.1} parent=5 // pred_check_branch
      %120 = sbr.rel (%p118) target = $region16
    $region15: #{dance_position_embedding.1} parent=5 // pred_region
      // Predicated region
      $region17: #{dance_position_embedding.1} parent=15 // pred_check
        %p121 = pneg %p42
      $region18: #{dance_position_embedding.1} parent=15 // pred_check_branch
        %123 = sbr.rel (%p121) target = $region20
      $region19: #{dance_position_embedding.1} parent=15 // pred_region
        %p124 = scmp.lt.s32.totalorder %s16, 0
        %s125 = scalar_select %p124, %s16, 0
        %p126 = scmp.lt.s32.totalorder %s15, 1
        %s127 = scalar_select %p126, %s15, 1
        %s128 = smul.addr %s125, 2
        %s129 = sadd.s32 %s127, %s128
        %s130 = smul.addr %s129, 8
        %s131 = scalar_lea.vmem %s0, %s130
      $region20: #{dance_position_embedding.1} parent=15 // pred_fallthru
        _
      // Predicated region
      $region21: #{dance_position_embedding.1} parent=15 // pred_check
        %p132 = pneg %p68
      $region22: #{dance_position_embedding.1} parent=15 // pred_check_branch
        %134 = sbr.rel (%p132) target = $region24
      $region23: #{dance_position_embedding.1} parent=15 // pred_region
        %p135 = scmp.lt.s32.totalorder %s15, 1
        %s136 = scalar_select %p135, %s15, 1
        %s137 = scalar_lea.vmem %s1, %s136
      $region24: #{dance_position_embedding.1} parent=15 // pred_fallthru
        _
    $region16: #{dance_position_embedding.1} parent=5 // pred_fallthru
      _
    %p138 = scmp.le.s32.totalorder 1, %s8
    %p139 = scmp.lt.s32.totalorder %s8, 3
    %p140 = pnand %p138, %p139
    %p141 = pneg %p140
    // Predicated region
    $region25: #{dance_position_embedding.1} parent=5 // pred_check
      _
    $region26: #{dance_position_embedding.1} parent=5 // pred_check_branch
      %143 = sbr.rel (%p140) target = $region28
    $region27: #{dance_position_embedding.1} parent=5 // pred_region
      %s144 = ssub.s32 %s8, 1
      %p145 = scmp.lt.s32.totalorder %s18, 0
      %s146 = scalar_select %p145, %s18, 0
      %p147 = scmp.lt.s32.totalorder %s17, 1
      %s148 = scalar_select %p147, %s17, 1
      %s149 = smul.addr %s146, 2
      %s150 = sadd.s32 %s148, %s149
      %s151 = smul.addr %s150, 8
      %s152 = scalar_lea.vmem %s0, %s151
      %p153 = pneg %p48
      %p154 = pneg %p45
      %p155 = scmp.lt.s32.totalorder %s17, 1
      %s156 = scalar_select %p155, %s17, 1
      %s157 = scalar_lea.vmem %s1, %s156
      %p158 = pneg %p74
      %p159 = pneg %p71
      %p160 = pneg %p102
      %p161 = pneg %p99
      %p162 = scmp.lt.s32.totalorder %s18, 0
      %s163 = scalar_select %p162, %s18, 0
      %p164 = scmp.lt.s32.totalorder %s17, 1
      %s165 = scalar_select %p164, %s17, 1
      %s166 = smul.addr %s163, 2
      %s167 = sadd.s32 %s165, %s166
      %s168 = smul.addr %s167, 8
      %s169 = scalar_lea.vmem %s2, %s168
      %p170 = scmp.lt.s32.totalorder %s18, 0
      %s171 = scalar_select %p170, %s18, 0
      %p172 = scmp.lt.s32.totalorder %s17, 1
      %s173 = scalar_select %p172, %s17, 1
      %s174 = smul.addr %s171, 2
      %s175 = sadd.s32 %s173, %s174
      %s176 = smul.addr %s175, 8
      %s177 = scalar_lea.vmem %s0, %s176
      %p178 = scmp.lt.s32.totalorder %s17, 1
      %s179 = scalar_select %p178, %s17, 1
      %s180 = scalar_lea.vmem %s1, %s179
      %p181 = scmp.lt.s32.totalorder %s18, 0
      %s182 = scalar_select %p181, %s18, 0
      %p183 = scmp.lt.s32.totalorder %s17, 1
      %s184 = scalar_select %p183, %s17, 1
      %s185 = smul.addr %s182, 2
      %s186 = sadd.s32 %s184, %s185
      %s187 = smul.addr %s186, 8
      %s188 = scalar_lea.vmem %s2, %s187
      %v189 = vld [vmem:[%s177] sm:$0xff]
      %v190 = vld [vmem:[%s180] sm:$0x1]
      %v192 = vperm.slane %v190, 0
      %v194 = vadd.f32 %v189, %v192
      %195 = vst [vmem:[%s188] sm:$0xff] %v194
      %p196 = scmp.lt.s32.totalorder %s18, 0
      %s197 = scalar_select %p196, %s18, 0
      %p198 = scmp.lt.s32.totalorder %s17, 1
      %s199 = scalar_select %p198, %s17, 1
      %s200 = smul.addr %s197, 2
      %s201 = sadd.s32 %s199, %s200
      %s202 = smul.addr %s201, 8
      %s203 = scalar_lea.vmem %s2, %s202
      // Predicated region
      $region29: #{dance_position_embedding.1} parent=27 // pred_check
        %p204 = pneg %p99
      $region30: #{dance_position_embedding.1} parent=27 // pred_check_branch
        %206 = sbr.rel (%p204) target = $region32
      $region31: #{dance_position_embedding.1} parent=27 // pred_region
        _
      $region32: #{dance_position_embedding.1} parent=27 // pred_fallthru
        _
    $region28: #{dance_position_embedding.1} parent=5 // pred_fallthru
      _
    %p207 = scmp.le.s32.totalorder 2, %s8
    // Predicated region
    $region33: #{dance_position_embedding.1} parent=5 // pred_check
      %p208 = pneg %p207
    $region34: #{dance_position_embedding.1} parent=5 // pred_check_branch
      %210 = sbr.rel (%p208) target = $region36
    $region35: #{dance_position_embedding.1} parent=5 // pred_region
      %s211 = ssub.s32 %s8, 2
      // Predicated region
      $region37: #{dance_position_embedding.1} parent=35 // pred_check
        %p212 = pneg %p105
      $region38: #{dance_position_embedding.1} parent=35 // pred_check_branch
        %214 = sbr.rel (%p212) target = $region40
      $region39: #{dance_position_embedding.1} parent=35 // pred_region
        %p215 = scmp.lt.s32.totalorder %s20, 0
        %s216 = scalar_select %p215, %s20, 0
        %p217 = scmp.lt.s32.totalorder %s19, 1
        %s218 = scalar_select %p217, %s19, 1
        %s219 = smul.addr %s216, 2
        %s220 = sadd.s32 %s218, %s219
        %s221 = smul.addr %s220, 8
        %s222 = scalar_lea.vmem %s2, %s221
      $region40: #{dance_position_embedding.1} parent=35 // pred_fallthru
        _
    $region36: #{dance_position_embedding.1} parent=5 // pred_fallthru
      _
  $region6: #{dance_position_embedding.1} parent=0 // loop_footer
    %s12 = sadd.s32 1, %s8
  $region7: #{dance_position_embedding.1} parent=0 // loop_footer_branch
    %7 = sbr.rel target = $region3
  $region8: #{dance_position_embedding.1} parent=0 // loop_exit
    _

</llo_original>
